<compile_context>
chip_gen: v7x
topology: tpu7x:2x2x1
jax: 0.10.0
libtpu: 0.0.40
codegen_flags: <defaults>
</compile_context>

<pallas_src>
from functools import partial

import jax
import jax.numpy as jnp
from jax.experimental import pallas as pl
from jax.experimental.pallas import tpu as pltpu  # noqa: F401  (TPU backend)

# ---- small model dims consistent with the module's forward --------------------------
BATCH = 2
SEQ = 8
HIDDEN = 32          # config.hidden_size
N_HEADS = 2
HEAD_DIM = HIDDEN // N_HEADS
D_FF = 64
VOCAB = 64
N_CLASSES_MULTI = 9  # nn.Linear(hidden_size, 9)
N_CLASSES_BIN = 2    # important / risk / sensitive heads
N_PAD = 128          # lane-dense padded head width
EPS = 1e-6


def _rms_norm(x, w):
    # T5/mT5 LayerNorm: RMS norm, no mean subtraction, no bias.
    var = jnp.mean(x * x, axis=-1, keepdims=True)
    return x * jax.lax.rsqrt(var + EPS) * w


# -------------------------------------------------------------------------------------
# Single fused Pallas kernel:
#   RMSNorm -> self-attention -> gated-GELU FFN -> final RMSNorm -> linear head (CLS rows)
# Whole batch in one invocation; no grid.
# -------------------------------------------------------------------------------------
def encoder_cls_kernel(x_ref, bias_ref, ln1_ref, wqkv_ref, wo_ref, ln2_ref,
                       wi_ref, wo_ff_ref, lnf_ref, hw_ref, hb_ref, out_ref):
    f32 = jnp.float32
    x = x_ref[...]                                   # (B*S, H), seq-major flattened
    bias = bias_ref[...]                             # (B*S, B*S) additive attention bias
    hdim = x.shape[1]
    head_dim = hdim // N_HEADS
    d_ff = wo_ff_ref.shape[0]
    n_cls_rows = out_ref.shape[0]                    # = BATCH (CLS rows live at [0, B))

    # ---------------- self attention (T5 style: no 1/sqrt(d) scaling) ----------------
    # TODO(synk): mT5 relative position bias omitted (depends on a learned bucket table).
    h = _rms_norm(x, ln1_ref[...])
    qkv = jnp.dot(h, wqkv_ref[...], preferred_element_type=f32)     # (B*S, 3H) fused QKV

    ctx_heads = []
    for hd in range(N_HEADS):                        # short static loop over heads
        q_h = qkv[:, hd * head_dim:(hd + 1) * head_dim]
        k_h = qkv[:, hdim + hd * head_dim: hdim + (hd + 1) * head_dim]
        v_h = qkv[:, 2 * hdim + hd * head_dim: 2 * hdim + (hd + 1) * head_dim]
        scores = jax.lax.dot_general(                # q_h @ k_h^T over the folded batch
            q_h, k_h, dimension_numbers=(((1,), (1,)), ((), ())),
            preferred_element_type=f32) + bias       # block-diag bias keeps batches apart
        m = jnp.max(scores, axis=-1, keepdims=True)
        e = jnp.exp(scores - m)
        p = e * pl.reciprocal(jnp.sum(e, axis=-1, keepdims=True), approx=True)
        ctx_heads.append(jnp.dot(p, v_h, preferred_element_type=f32))   # (B*S, head_dim)

    ctx = jnp.concatenate(ctx_heads, axis=-1)        # (B*S, H)
    x = x + jnp.dot(ctx, wo_ref[...], preferred_element_type=f32)   # single full-wo matmul

    # ---------------- gated-GELU feed-forward (mT5 style), fused wi_0|wi_1 ------------
    h2 = _rms_norm(x, ln2_ref[...])
    ff = jnp.dot(h2, wi_ref[...], preferred_element_type=f32)       # (B*S, 2*D_FF)=(16,128)
    g = jax.nn.gelu(ff[:, :d_ff], approximate=True)                 # gelu_new ~ tanh approx
    lin = ff[:, d_ff:]
    x = x + jnp.dot(g * lin, wo_ff_ref[...], preferred_element_type=f32)

    # ---------------- final encoder-stack RMSNorm + classification head ---------------
    # Seq-major flattening puts the CLS token of every batch element in rows [0, B).
    cls = _rms_norm(x[0:n_cls_rows, :], lnf_ref[...])               # (B, H)
    out_ref[...] = (jnp.dot(cls, hw_ref[...], preferred_element_type=f32)
                    + hb_ref[...])                                   # (B, 128) lane-dense


def mt5_encoder_classify(params, emb, attention_mask, head_w, head_b):
    """emb: (B, S, H) embeddings; attention_mask: (B, S). Returns (B, n_classes) logits."""
    B, S, H = emb.shape
    bs = B * S

    # seq-major flatten: row i = token (s = i // B) of batch (b = i % B)
    x2d = jnp.transpose(emb, (1, 0, 2)).reshape(bs, H).astype(jnp.float32)

    # additive attention bias: block-diagonal over batches + key-padding mask (tiny, built once)
    idx = jnp.arange(bs, dtype=jnp.int32)
    same_batch = (idx[:, None] % B) == (idx[None, :] % B)
    key_keep = (jnp.transpose(attention_mask).reshape(bs) > 0)[None, :]
    bias = jnp.where(same_batch & key_keep, 0.0, -1e9).astype(jnp.float32)

    # pad head to 128 output lanes -> unmasked (lane-dense) stores; slice back afterwards
    n_cls = head_w.shape[1]
    hw_pad = jnp.zeros((H, N_PAD), jnp.float32).at[:, :n_cls].set(head_w)
    hb_pad = jnp.zeros((1, N_PAD), jnp.float32).at[:, :n_cls].set(head_b)

    logits_pad = pl.pallas_call(
        encoder_cls_kernel,
        out_shape=jax.ShapeDtypeStruct((B, N_PAD), jnp.float32),
    )(x2d, bias, params["ln1"], params["wqkv"], params["wo"], params["ln2"],
      params["wi"], params["wo_ff"], params["lnf"], hw_pad, hb_pad)

    return logits_pad[:, :n_cls]


# -------------------------------------------------------------------------------------
# Parameters (deterministic, synthetic) & forward pass
# -------------------------------------------------------------------------------------
def init_params(key):
    ks = jax.random.split(key, 12)
    w = lambda k, shape, s=0.05: (s * jax.random.normal(k, shape)).astype(jnp.float32)
    wq, wk_, wv = (w(ks[1], (HIDDEN, HIDDEN)), w(ks[2], (HIDDEN, HIDDEN)),
                   w(ks[3], (HIDDEN, HIDDEN)))
    wi0, wi1 = w(ks[5], (HIDDEN, D_FF)), w(ks[6], (HIDDEN, D_FF))
    return {
        "embed": w(ks[0], (VOCAB, HIDDEN)),
        "ln1": jnp.ones((1, HIDDEN), jnp.float32),
        "wqkv": jnp.concatenate([wq, wk_, wv], axis=1),      # fused (H, 3H)
        "wo": w(ks[4], (HIDDEN, HIDDEN)),
        "ln2": jnp.ones((1, HIDDEN), jnp.float32),
        "wi": jnp.concatenate([wi0, wi1], axis=1),           # fused gated-FFN (H, 2*D_FF)
        "wo_ff": w(ks[7], (D_FF, HIDDEN)),
        "lnf": jnp.ones((1, HIDDEN), jnp.float32),
        # classification heads from CustomMT5Model.__init__
        "multi_w": w(ks[8], (HIDDEN, N_CLASSES_MULTI)),
        "multi_b": jnp.zeros((1, N_CLASSES_MULTI), jnp.float32),
        "important_w": w(ks[9], (HIDDEN, N_CLASSES_BIN)),
        "important_b": jnp.zeros((1, N_CLASSES_BIN), jnp.float32),
        "risk_w": w(ks[10], (HIDDEN, N_CLASSES_BIN)),
        "risk_b": jnp.zeros((1, N_CLASSES_BIN), jnp.float32),
        "sensitive_w": w(ks[11], (HIDDEN, N_CLASSES_BIN)),
        "sensitive_b": jnp.zeros((1, N_CLASSES_BIN), jnp.float32),
    }


@partial(jax.jit, static_argnames=("task",))
def custom_mt5_forward(params, input_ids, attention_mask, task="multi"):
    # encoder_outputs = self.model.encoder(input_ids, attention_mask=attention_mask)
    emb = jnp.take(params["embed"], input_ids, axis=0)          # (B, S, H) token embed
    heads = {
        "important": ("important_w", "important_b"),
        "risk": ("risk_w", "risk_b"),
        "sensitive": ("sensitive_w", "sensitive_b"),
        "multi": ("multi_w", "multi_b"),
    }
    # TODO(synk): 'rewrite'/'generate' tasks (full seq2seq decode / beam search) have no
    # clean single-kernel Pallas equivalent and are out of scope here.
    wk, bk = heads[task]
    return mt5_encoder_classify(params, emb, attention_mask, params[wk], params[bk])


if __name__ == "__main__":
    key = jax.random.PRNGKey(0)
    pkey, ikey = jax.random.split(key)
    params = init_params(pkey)

    input_ids = jax.random.randint(ikey, (BATCH, SEQ), 0, VOCAB, dtype=jnp.int32)
    attention_mask = jnp.ones((BATCH, SEQ), dtype=jnp.int32)

    logits = custom_mt5_forward(params, input_ids, attention_mask, task="multi")
    jax.block_until_ready(logits)
    assert logits.shape == (BATCH, N_CLASSES_MULTI)
    assert bool(jnp.all(jnp.isfinite(logits)))
    print("KERNEL_OK")
</pallas_src>

<mosaic_0001>
module attributes {stable_mosaic.version = 11 : i64} {
  func.func @encoder_cls_kernel(%arg0: memref<16x32xf32, #tpu.memory_space<vmem>>, %arg1: memref<16x16xf32, #tpu.memory_space<vmem>>, %arg2: memref<1x32xf32, #tpu.memory_space<vmem>>, %arg3: memref<32x96xf32, #tpu.memory_space<vmem>>, %arg4: memref<32x32xf32, #tpu.memory_space<vmem>>, %arg5: memref<1x32xf32, #tpu.memory_space<vmem>>, %arg6: memref<32x128xf32, #tpu.memory_space<vmem>>, %arg7: memref<64x32xf32, #tpu.memory_space<vmem>>, %arg8: memref<1x32xf32, #tpu.memory_space<vmem>>, %arg9: memref<32x128xf32, #tpu.memory_space<vmem>>, %arg10: memref<1x128xf32, #tpu.memory_space<vmem>>, %arg11: memref<2x128xf32, #tpu.memory_space<vmem>>) attributes {dimension_semantics = [], scalar_prefetch = 0 : i64, scratch_operands = 0 : i64, tpu.core_type = #tpu.core_type<tc>} {
    %c0 = arith.constant 0 : index
    %c0_0 = arith.constant 0 : index
    %0 = vector.load %arg0[%c0, %c0_0] : memref<16x32xf32, #tpu.memory_space<vmem>>, vector<16x32xf32>
    %c0_1 = arith.constant 0 : index
    %c0_2 = arith.constant 0 : index
    %1 = vector.load %arg1[%c0_1, %c0_2] : memref<16x16xf32, #tpu.memory_space<vmem>>, vector<16x16xf32>
    %c0_3 = arith.constant 0 : index
    %c0_4 = arith.constant 0 : index
    %2 = vector.load %arg2[%c0_3, %c0_4] : memref<1x32xf32, #tpu.memory_space<vmem>>, vector<1x32xf32>
    %3 = arith.mulf %0, %0 : vector<16x32xf32>
    %cst = arith.constant dense<0.000000e+00> : vector<16xf32>
    %4 = vector.multi_reduction <add>, %3, %cst [1] : vector<16x32xf32> to vector<16xf32>
    %5 = vector.shape_cast %4 : vector<16xf32> to vector<16x1xf32>
    %cst_5 = arith.constant 3.200000e+01 : f32
    %6 = vector.broadcast %cst_5 : f32 to vector<16x1xf32>
    %7 = arith.divf %5, %6 : vector<16x1xf32>
    %cst_6 = arith.constant 9.99999997E-7 : f32
    %8 = vector.broadcast %cst_6 : f32 to vector<16x1xf32>
    %9 = arith.addf %7, %8 : vector<16x1xf32>
    %10 = math.rsqrt %9 : vector<16x1xf32>
    %11 = vector.broadcast %10 : vector<16x1xf32> to vector<16x32xf32>
    %12 = arith.mulf %0, %11 : vector<16x32xf32>
    %13 = vector.broadcast %2 : vector<1x32xf32> to vector<16x32xf32>
    %14 = arith.mulf %12, %13 : vector<16x32xf32>
    %c0_7 = arith.constant 0 : index
    %c0_8 = arith.constant 0 : index
    %15 = vector.load %arg3[%c0_7, %c0_8] : memref<32x96xf32, #tpu.memory_space<vmem>>, vector<32x96xf32>
    %cst_9 = arith.constant dense<0.000000e+00> : vector<16x96xf32>
    %16 = tpu.matmul %14, %15, %cst_9 {dimension_numbers = #tpu.dot_dimension_numbers<[1], [0], [0], [1], [0, 0, 1, 1], [], []>} : vector<16x32xf32>, vector<32x96xf32>, vector<16x96xf32> -> vector<16x96xf32>
    %17 = vector.extract_strided_slice %16 {offsets = [0, 0], sizes = [16, 16], strides = [1, 1]} : vector<16x96xf32> to vector<16x16xf32>
    %18 = vector.extract_strided_slice %16 {offsets = [0, 32], sizes = [16, 16], strides = [1, 1]} : vector<16x96xf32> to vector<16x16xf32>
    %19 = vector.extract_strided_slice %16 {offsets = [0, 64], sizes = [16, 16], strides = [1, 1]} : vector<16x96xf32> to vector<16x16xf32>
    %cst_10 = arith.constant dense<0.000000e+00> : vector<16x16xf32>
    %20 = tpu.matmul %17, %18, %cst_10 {dimension_numbers = #tpu.dot_dimension_numbers<[1], [1], [0], [0], [0, 0, 1, 0], [], []>} : vector<16x16xf32>, vector<16x16xf32>, vector<16x16xf32> -> vector<16x16xf32>
    %21 = arith.addf %20, %1 : vector<16x16xf32>
    %cst_11 = arith.constant dense<0xFF800000> : vector<16xf32>
    %22 = vector.multi_reduction <maximumf>, %21, %cst_11 [1] : vector<16x16xf32> to vector<16xf32>
    %23 = vector.shape_cast %22 : vector<16xf32> to vector<16x1xf32>
    %24 = vector.broadcast %23 : vector<16x1xf32> to vector<16x16xf32>
    %25 = arith.subf %21, %24 : vector<16x16xf32>
    %26 = math.exp %25 : vector<16x16xf32>
    %cst_12 = arith.constant dense<0.000000e+00> : vector<16xf32>
    %27 = vector.multi_reduction <add>, %26, %cst_12 [1] : vector<16x16xf32> to vector<16xf32>
    %28 = vector.shape_cast %27 : vector<16xf32> to vector<16x1xf32>
    %29 = tpu.reciprocal %28 {approx = true} : vector<16x1xf32> -> vector<16x1xf32>
    %30 = vector.broadcast %29 : vector<16x1xf32> to vector<16x16xf32>
    %31 = arith.mulf %26, %30 : vector<16x16xf32>
    %cst_13 = arith.constant dense<0.000000e+00> : vector<16x16xf32>
    %32 = tpu.matmul %31, %19, %cst_13 {dimension_numbers = #tpu.dot_dimension_numbers<[1], [0], [0], [1], [0, 0, 1, 1], [], []>} : vector<16x16xf32>, vector<16x16xf32>, vector<16x16xf32> -> vector<16x16xf32>
    %33 = vector.extract_strided_slice %16 {offsets = [0, 16], sizes = [16, 16], strides = [1, 1]} : vector<16x96xf32> to vector<16x16xf32>
    %34 = vector.extract_strided_slice %16 {offsets = [0, 48], sizes = [16, 16], strides = [1, 1]} : vector<16x96xf32> to vector<16x16xf32>
    %35 = vector.extract_strided_slice %16 {offsets = [0, 80], sizes = [16, 16], strides = [1, 1]} : vector<16x96xf32> to vector<16x16xf32>
    %cst_14 = arith.constant dense<0.000000e+00> : vector<16x16xf32>
    %36 = tpu.matmul %33, %34, %cst_14 {dimension_numbers = #tpu.dot_dimension_numbers<[1], [1], [0], [0], [0, 0, 1, 0], [], []>} : vector<16x16xf32>, vector<16x16xf32>, vector<16x16xf32> -> vector<16x16xf32>
    %37 = arith.addf %36, %1 : vector<16x16xf32>
    %cst_15 = arith.constant dense<0xFF800000> : vector<16xf32>
    %38 = vector.multi_reduction <maximumf>, %37, %cst_15 [1] : vector<16x16xf32> to vector<16xf32>
    %39 = vector.shape_cast %38 : vector<16xf32> to vector<16x1xf32>
    %40 = vector.broadcast %39 : vector<16x1xf32> to vector<16x16xf32>
    %41 = arith.subf %37, %40 : vector<16x16xf32>
    %42 = math.exp %41 : vector<16x16xf32>
    %cst_16 = arith.constant dense<0.000000e+00> : vector<16xf32>
    %43 = vector.multi_reduction <add>, %42, %cst_16 [1] : vector<16x16xf32> to vector<16xf32>
    %44 = vector.shape_cast %43 : vector<16xf32> to vector<16x1xf32>
    %45 = tpu.reciprocal %44 {approx = true} : vector<16x1xf32> -> vector<16x1xf32>
    %46 = vector.broadcast %45 : vector<16x1xf32> to vector<16x16xf32>
    %47 = arith.mulf %42, %46 : vector<16x16xf32>
    %cst_17 = arith.constant dense<0.000000e+00> : vector<16x16xf32>
    %48 = tpu.matmul %47, %35, %cst_17 {dimension_numbers = #tpu.dot_dimension_numbers<[1], [0], [0], [1], [0, 0, 1, 1], [], []>} : vector<16x16xf32>, vector<16x16xf32>, vector<16x16xf32> -> vector<16x16xf32>
    %49 = tpu.concatenate %32, %48 in 1 : vector<16x16xf32>, vector<16x16xf32> -> vector<16x32xf32>
    %c0_18 = arith.constant 0 : index
    %c0_19 = arith.constant 0 : index
    %50 = vector.load %arg4[%c0_18, %c0_19] : memref<32x32xf32, #tpu.memory_space<vmem>>, vector<32x32xf32>
    %cst_20 = arith.constant dense<0.000000e+00> : vector<16x32xf32>
    %51 = tpu.matmul %49, %50, %cst_20 {dimension_numbers = #tpu.dot_dimension_numbers<[1], [0], [0], [1], [0, 0, 1, 1], [], []>} : vector<16x32xf32>, vector<32x32xf32>, vector<16x32xf32> -> vector<16x32xf32>
    %52 = arith.addf %0, %51 : vector<16x32xf32>
    %c0_21 = arith.constant 0 : index
    %c0_22 = arith.constant 0 : index
    %53 = vector.load %arg5[%c0_21, %c0_22] : memref<1x32xf32, #tpu.memory_space<vmem>>, vector<1x32xf32>
    %54 = arith.mulf %52, %52 : vector<16x32xf32>
    %cst_23 = arith.constant dense<0.000000e+00> : vector<16xf32>
    %55 = vector.multi_reduction <add>, %54, %cst_23 [1] : vector<16x32xf32> to vector<16xf32>
    %56 = vector.shape_cast %55 : vector<16xf32> to vector<16x1xf32>
    %cst_24 = arith.constant 3.200000e+01 : f32
    %57 = vector.broadcast %cst_24 : f32 to vector<16x1xf32>
    %58 = arith.divf %56, %57 : vector<16x1xf32>
    %cst_25 = arith.constant 9.99999997E-7 : f32
    %59 = vector.broadcast %cst_25 : f32 to vector<16x1xf32>
    %60 = arith.addf %58, %59 : vector<16x1xf32>
    %61 = math.rsqrt %60 : vector<16x1xf32>
    %62 = vector.broadcast %61 : vector<16x1xf32> to vector<16x32xf32>
    %63 = arith.mulf %52, %62 : vector<16x32xf32>
    %64 = vector.broadcast %53 : vector<1x32xf32> to vector<16x32xf32>
    %65 = arith.mulf %63, %64 : vector<16x32xf32>
    %c0_26 = arith.constant 0 : index
    %c0_27 = arith.constant 0 : index
    %66 = vector.load %arg6[%c0_26, %c0_27] : memref<32x128xf32, #tpu.memory_space<vmem>>, vector<32x128xf32>
    %cst_28 = arith.constant dense<0.000000e+00> : vector<16x128xf32>
    %67 = tpu.matmul %65, %66, %cst_28 {dimension_numbers = #tpu.dot_dimension_numbers<[1], [0], [0], [1], [0, 0, 1, 1], [], []>} : vector<16x32xf32>, vector<32x128xf32>, vector<16x128xf32> -> vector<16x128xf32>
    %68 = vector.extract_strided_slice %67 {offsets = [0, 0], sizes = [16, 64], strides = [1, 1]} : vector<16x128xf32> to vector<16x64xf32>
    %69 = arith.mulf %68, %68 : vector<16x64xf32>
    %70 = arith.mulf %68, %69 : vector<16x64xf32>
    %cst_29 = arith.constant 4.471500e-02 : f32
    %71 = vector.broadcast %cst_29 : f32 to vector<16x64xf32>
    %72 = arith.mulf %71, %70 : vector<16x64xf32>
    %73 = arith.addf %68, %72 : vector<16x64xf32>
    %cst_30 = arith.constant 0.797884583 : f32
    %74 = vector.broadcast %cst_30 : f32 to vector<16x64xf32>
    %75 = arith.mulf %74, %73 : vector<16x64xf32>
    %76 = math.tanh %75 : vector<16x64xf32>
    %cst_31 = arith.constant 1.000000e+00 : f32
    %77 = vector.broadcast %cst_31 : f32 to vector<16x64xf32>
    %78 = arith.addf %77, %76 : vector<16x64xf32>
    %cst_32 = arith.constant 5.000000e-01 : f32
    %79 = vector.broadcast %cst_32 : f32 to vector<16x64xf32>
    %80 = arith.mulf %79, %78 : vector<16x64xf32>
    %81 = arith.mulf %68, %80 : vector<16x64xf32>
    %82 = vector.extract_strided_slice %67 {offsets = [0, 64], sizes = [16, 64], strides = [1, 1]} : vector<16x128xf32> to vector<16x64xf32>
    %83 = arith.mulf %81, %82 : vector<16x64xf32>
    %c0_33 = arith.constant 0 : index
    %c0_34 = arith.constant 0 : index
    %84 = vector.load %arg7[%c0_33, %c0_34] : memref<64x32xf32, #tpu.memory_space<vmem>>, vector<64x32xf32>
    %cst_35 = arith.constant dense<0.000000e+00> : vector<16x32xf32>
    %85 = tpu.matmul %83, %84, %cst_35 {dimension_numbers = #tpu.dot_dimension_numbers<[1], [0], [0], [1], [0, 0, 1, 1], [], []>} : vector<16x64xf32>, vector<64x32xf32>, vector<16x32xf32> -> vector<16x32xf32>
    %86 = arith.addf %52, %85 : vector<16x32xf32>
    %87 = vector.extract_strided_slice %86 {offsets = [0, 0], sizes = [2, 32], strides = [1, 1]} : vector<16x32xf32> to vector<2x32xf32>
    %c0_36 = arith.constant 0 : index
    %c0_37 = arith.constant 0 : index
    %88 = vector.load %arg8[%c0_36, %c0_37] : memref<1x32xf32, #tpu.memory_space<vmem>>, vector<1x32xf32>
    %89 = arith.mulf %87, %87 : vector<2x32xf32>
    %cst_38 = arith.constant dense<0.000000e+00> : vector<2xf32>
    %90 = vector.multi_reduction <add>, %89, %cst_38 [1] : vector<2x32xf32> to vector<2xf32>
    %91 = vector.shape_cast %90 : vector<2xf32> to vector<2x1xf32>
    %cst_39 = arith.constant 3.200000e+01 : f32
    %92 = vector.broadcast %cst_39 : f32 to vector<2x1xf32>
    %93 = arith.divf %91, %92 : vector<2x1xf32>
    %cst_40 = arith.constant 9.99999997E-7 : f32
    %94 = vector.broadcast %cst_40 : f32 to vector<2x1xf32>
    %95 = arith.addf %93, %94 : vector<2x1xf32>
    %96 = math.rsqrt %95 : vector<2x1xf32>
    %97 = vector.broadcast %96 : vector<2x1xf32> to vector<2x32xf32>
    %98 = arith.mulf %87, %97 : vector<2x32xf32>
    %99 = vector.broadcast %88 : vector<1x32xf32> to vector<2x32xf32>
    %100 = arith.mulf %98, %99 : vector<2x32xf32>
    %c0_41 = arith.constant 0 : index
    %c0_42 = arith.constant 0 : index
    %101 = vector.load %arg9[%c0_41, %c0_42] : memref<32x128xf32, #tpu.memory_space<vmem>>, vector<32x128xf32>
    %cst_43 = arith.constant dense<0.000000e+00> : vector<2x128xf32>
    %102 = tpu.matmul %100, %101, %cst_43 {dimension_numbers = #tpu.dot_dimension_numbers<[1], [0], [0], [1], [0, 0, 1, 1], [], []>} : vector<2x32xf32>, vector<32x128xf32>, vector<2x128xf32> -> vector<2x128xf32>
    %c0_44 = arith.constant 0 : index
    %c0_45 = arith.constant 0 : index
    %103 = vector.load %arg10[%c0_44, %c0_45] : memref<1x128xf32, #tpu.memory_space<vmem>>, vector<1x128xf32>
    %104 = vector.broadcast %103 : vector<1x128xf32> to vector<2x128xf32>
    %105 = arith.addf %102, %104 : vector<2x128xf32>
    %c0_46 = arith.constant 0 : index
    %c0_47 = arith.constant 0 : index
    %106 = vector.load %arg11[%c0_46, %c0_47] : memref<2x128xf32, #tpu.memory_space<vmem>>, vector<2x128xf32>
    tpu.vector_store %arg11[%c0_46, %c0_47], %105 {strides = array<i32>} : memref<2x128xf32, #tpu.memory_space<vmem>>, vector<2x128xf32>,
    return
  }
}

</mosaic_0001>

<llo_original>
// kernel: custom_mt5_forward.1
$region0: #{custom_mt5_forward.1}
  #allocation0 [shape = 'u32[]', space=smem, size = 0x4, offset = 0x4, fixed_abs, tag = 'smem constant byte address 0x4 - core index']
  #allocation1 [shape = 'u32[144,128]{1,0:T(1,128)}', space=vmem, size = 0x12000, scoped, tag = 'internal scratch']
  %s0 = inlined_call_operand.vmem [shape: f32[16,32], index: 0, kind: input, shape index: {}]
  %s1 = inlined_call_operand.vmem [shape: f32[16,16], index: 1, kind: input, shape index: {}]
  %s2 = inlined_call_operand.vmem [shape: f32[1,32], index: 2, kind: input, shape index: {}]
  %s3 = inlined_call_operand.vmem [shape: f32[32,96], index: 3, kind: input, shape index: {}]
  %s4 = inlined_call_operand.vmem [shape: f32[32,32], index: 4, kind: input, shape index: {}]
  %s5 = inlined_call_operand.vmem [shape: f32[1,32], index: 5, kind: input, shape index: {}]
  %s6 = inlined_call_operand.vmem [shape: f32[32,128], index: 6, kind: input, shape index: {}]
  %s7 = inlined_call_operand.vmem [shape: f32[64,32], index: 7, kind: input, shape index: {}]
  %s8 = inlined_call_operand.vmem [shape: f32[1,32], index: 8, kind: input, shape index: {}]
  %s9 = inlined_call_operand.vmem [shape: f32[32,128], index: 9, kind: input, shape index: {}]
  %s10 = inlined_call_operand.vmem [shape: f32[1,128], index: 10, kind: input, shape index: {}]
  %s11 = inlined_call_operand.hbm [shape: f32[2,128], index: 11, kind: output, shape index: {}]
  %s12 = sld [smem:[#allocation0]]
  $region54: #{custom_mt5_forward.1} parent=0
    _
  %s14 = ssub.s32 1, %s12
  %s15 = scalar_select 0, %s14, %s12
  $region1: #{custom_mt5_forward.1} parent=0
    #allocation2 [shape = 'u8[1024]{0}', space=vmem, size = 0x400, scoped, tag = 'output window, operand 0, single buffered']
    #allocation3 [shape = 's32[1]{0}', space=sflag, size = 0x4, scoped, tag = 'scoped memory for custom_mt5_forward.1']
    %16 = vsyncpa [#allocation3], 0
    // Predicated region
    $region2: #{custom_mt5_forward.1} parent=1 // pred_check
      _
    $region3: #{custom_mt5_forward.1} parent=1 // pred_check_branch
      %18 = sbr.rel (0) target = $region5
    $region4: #{custom_mt5_forward.1} parent=1 // pred_region
      _
    $region5: #{custom_mt5_forward.1} parent=1 // pred_fallthru
      _
    // Predicated region
    $region6: #{custom_mt5_forward.1} parent=1 // pred_check
      _
    $region7: #{custom_mt5_forward.1} parent=1 // pred_check_branch
      %20 = sbr.rel (0) target = $region9
    $region8: #{custom_mt5_forward.1} parent=1 // pred_region
      _
    $region9: #{custom_mt5_forward.1} parent=1 // pred_fallthru
      _
    // Predicated region
    $region10: #{custom_mt5_forward.1} parent=1 // pred_check
      _
    $region11: #{custom_mt5_forward.1} parent=1 // pred_check_branch
      %22 = sbr.rel (0) target = $region13
    $region12: #{custom_mt5_forward.1} parent=1 // pred_region
      _
    $region13: #{custom_mt5_forward.1} parent=1 // pred_fallthru
      _
    // Predicated region
    $region14: #{custom_mt5_forward.1} parent=1 // pred_check
      _
    $region15: #{custom_mt5_forward.1} parent=1 // pred_check_branch
      %24 = sbr.rel (0) target = $region17
    $region16: #{custom_mt5_forward.1} parent=1 // pred_region
      _
    $region17: #{custom_mt5_forward.1} parent=1 // pred_fallthru
      _
    // Predicated region
    $region18: #{custom_mt5_forward.1} parent=1 // pred_check
      _
    $region19: #{custom_mt5_forward.1} parent=1 // pred_check_branch
      %26 = sbr.rel (0) target = $region21
    $region20: #{custom_mt5_forward.1} parent=1 // pred_region
      _
    $region21: #{custom_mt5_forward.1} parent=1 // pred_fallthru
      _
    // Predicated region
    $region22: #{custom_mt5_forward.1} parent=1 // pred_check
      _
    $region23: #{custom_mt5_forward.1} parent=1 // pred_check_branch
      %28 = sbr.rel (0) target = $region25
    $region24: #{custom_mt5_forward.1} parent=1 // pred_region
      _
    $region25: #{custom_mt5_forward.1} parent=1 // pred_fallthru
      _
    // Predicated region
    $region26: #{custom_mt5_forward.1} parent=1 // pred_check
      _
    $region27: #{custom_mt5_forward.1} parent=1 // pred_check_branch
      %30 = sbr.rel (0) target = $region29
    $region28: #{custom_mt5_forward.1} parent=1 // pred_region
      _
    $region29: #{custom_mt5_forward.1} parent=1 // pred_fallthru
      _
    // Predicated region
    $region30: #{custom_mt5_forward.1} parent=1 // pred_check
      _
    $region31: #{custom_mt5_forward.1} parent=1 // pred_check_branch
      %32 = sbr.rel (0) target = $region33
    $region32: #{custom_mt5_forward.1} parent=1 // pred_region
      _
    $region33: #{custom_mt5_forward.1} parent=1 // pred_fallthru
      _
    // Predicated region
    $region34: #{custom_mt5_forward.1} parent=1 // pred_check
      _
    $region35: #{custom_mt5_forward.1} parent=1 // pred_check_branch
      %34 = sbr.rel (0) target = $region37
    $region36: #{custom_mt5_forward.1} parent=1 // pred_region
      _
    $region37: #{custom_mt5_forward.1} parent=1 // pred_fallthru
      _
    // Predicated region
    $region38: #{custom_mt5_forward.1} parent=1 // pred_check
      _
    $region39: #{custom_mt5_forward.1} parent=1 // pred_check_branch
      %36 = sbr.rel (0) target = $region41
    $region40: #{custom_mt5_forward.1} parent=1 // pred_region
      _
    $region41: #{custom_mt5_forward.1} parent=1 // pred_fallthru
      _
    // Predicated region
    $region42: #{custom_mt5_forward.1} parent=1 // pred_check
      _
    $region43: #{custom_mt5_forward.1} parent=1 // pred_check_branch
      %38 = sbr.rel (0) target = $region45
    $region44: #{custom_mt5_forward.1} parent=1 // pred_region
      _
    $region45: #{custom_mt5_forward.1} parent=1 // pred_fallthru
      _
    %v39 = vld [vmem:[%s0] sm:$0xff]
    %v40 = vld [vmem:[%s0 + $0x8] sm:$0xff]
    %v41 = vld [vmem:[%s1] sm:$0xff]
    %v42 = vld [vmem:[%s1 + $0x8] sm:$0xff]
    %v43 = vld [vmem:[%s2] sm:$0x1]
    %v44 = vmul.f32 %v39, %v39
    %v45 = vmul.f32 %v40, %v40
    %vm46 = vcmask 261120
    %v47 = vsel %vm46, %v44, 0.0
    %48 = vadd.xlane.f32.xlu0 %v47
    %v49 = vpop.xlane.xlu0 %48
    %v50 = vsel %vm46, %v45, 0.0
    %51 = vadd.xlane.f32.xlu0 %v50
    %v52 = vpop.xlane.xlu0 %51
    %v53 = vrcp.pop 32.0
    %v54 = vmul.f32 %v49, %v53
    %v55 = vmul.f32 %v52, %v53
    %v56 = vadd.f32 %v54, 1e-06
    %v57 = vadd.f32 %v55, 1e-06
    %v58 = vrsqrt.pop %v56
    %v59 = vrsqrt.pop %v57
    %v60 = vmul.f32 %v39, %v58
    %v61 = vmul.f32 %v40, %v59
    %v63 = vlaneseq
    %v64 = vshrl.u32 %v63, 7
    %v65 = vsub.s32 0, %v64
    %v66 = vrot.slane %v43, %v65
    %v68 = vmul.f32 %v60, %v66
    %v69 = vmul.f32 %v61, %v66
    %v70 = vld [vmem:[%s3] sm:$0xff]
    %v71 = vld [vmem:[%s3 + $0x8] sm:$0xff]
    %v72 = vld [vmem:[%s3 + $0x10] sm:$0xff]
    %v73 = vld [vmem:[%s3 + $0x18] sm:$0xff]
    %v75 = vsel %vm46, %v68, 0
    %v78 = vsel %vm46, %v69, 0
    %80 = vmatprep.subr.mxu0 0.0
    %81 = vmatpush1.msra.mxu0 %v70
    %82 = vmatprep.subr.mxu0 0.0
    %83 = vmatpush1.msra.mxu0 %v71
    %84 = vmatprep.subr.mxu0 0.0
    %85 = vmatpush1.msra.mxu0 %v72
    %86 = vmatprep.subr.mxu0 0.0
    %87 = vmatpush1.msra.mxu0 %v73
    %88 = vmatprep.subr.mxu0 0.0
    %89 = vmatpush1.msra.mxu0 0.0
    %90 = vmatprep.subr.mxu0 0.0
    %91 = vmatpush1.msra.mxu0 0.0
    %92 = vmatprep.subr.mxu0 0.0
    %93 = vmatpush1.msra.mxu0 0.0
    %94 = vmatprep.subr.mxu0 0.0
    %95 = vmatpush1.msra.mxu0 0.0
    %96 = vmatprep.subr.mxu0 0.0
    %97 = vmatpush1.msra.mxu0 0.0
    %98 = vmatprep.subr.mxu0 0.0
    %99 = vmatpush1.msra.mxu0 0.0
    %100 = vmatprep.subr.mxu0 0.0
    %101 = vmatpush1.msra.mxu0 0.0
    %102 = vmatprep.subr.mxu0 0.0
    %103 = vmatpush1.msra.mxu0 0.0
    %104 = vmatprep.subr.mxu0 0.0
    %105 = vmatpush1.msra.mxu0 0.0
    %106 = vmatprep.subr.mxu0 0.0
    %107 = vmatpush1.msra.mxu0 0.0
    %108 = vmatprep.subr.mxu0 0.0
    %109 = vmatpush1.msra.mxu0 0.0
    %110 = vmatprep.subr.mxu0 0.0
    %111 = vmatpush1.msra.mxu0 0.0
    %112 = vmatprep.subr.mxu0 0.0
    %113 = vmatpush1.msra.mxu0 0.0
    %114 = vmatprep.subr.mxu0 0.0
    %115 = vmatpush1.msra.mxu0 0.0
    %116 = vmatprep.subr.mxu0 0.0
    %117 = vmatpush1.msra.mxu0 0.0
    %118 = vmatprep.subr.mxu0 0.0
    %119 = vmatpush1.msra.mxu0 0.0
    %120 = vmatprep.subr.mxu0 0.0
    %121 = vmatpush1.msra.mxu0 0.0
    %122 = vmatprep.subr.mxu0 0.0
    %123 = vmatpush1.msra.mxu0 0.0
    %124 = vmatprep.subr.mxu0 0.0
    %125 = vmatpush1.msra.mxu0 0.0
    %126 = vmatprep.subr.mxu0 0.0
    %127 = vmatpush1.msra.mxu0 0.0
    %128 = vmatprep.subr.mxu0 0.0
    %129 = vmatpush1.msra.mxu0 0.0
    %130 = vmatprep.subr.mxu0 0.0
    %131 = vmatpush1.msra.mxu0 0.0
    %132 = vmatprep.subr.mxu0 0.0
    %133 = vmatpush1.msra.mxu0 0.0
    %134 = vmatprep.subr.mxu0 0.0
    %135 = vmatpush1.msra.mxu0 0.0
    %136 = vmatprep.subr.mxu0 0.0
    %137 = vmatpush1.msra.mxu0 0.0
    %138 = vmatprep.subr.mxu0 0.0
    %139 = vmatpush1.msra.mxu0 0.0
    %140 = vmatprep.subr.mxu0 0.0
    %141 = vmatpush1.msra.mxu0 0.0
    %142 = vmatprep.subr.mxu0 0.0
    %143 = vmatpush1.msra.mxu0 0.0
    %144 = vmatprep.mubr.f32.mxu0 0.0
    %145 = vmatmul.mubr.f32.gmra.mrb[0].mxu0 %v75
    %v146 = vpop.f32.mrb[0].mxu0
    %v147 = vadd.f32 0.0, %v146
    %v148 = vpop.f32.mrb[0].mxu0
    %149 = vmatprep.mubr.f32.mxu0 0.0
    %150 = vmatmul.mubr.f32.gmra.mrb[0].mxu0 %v78
    %v151 = vpop.f32.mrb[0].mxu0
    %v152 = vadd.f32 0.0, %v151
    %v153 = vpop.f32.mrb[0].mxu0
    %154 = vdwg.mxu0
    %157 = vrot.lane.b32.xlu0 %v147, 96
    %v158 = vpop.permute.xlu0 %157
    %159 = vrot.lane.b32.xlu0 %v152, 96
    %v160 = vpop.permute.xlu0 %159
    %vm161 = vcmask 130048
    %v162 = vsel %vm161, %v147, 0
    %v164 = vsel %vm161, %v152, 0
    %v166 = vsel %vm161, %v158, 0
    %v168 = vsel %vm161, %v160, 0
    %170 = vmatprep.subr.mxu0 0.0
    %171 = vmatpush1.xpose.msra.mxu0 %v166
    %172 = vmatprep.subr.mxu0 0.0
    %173 = vmatpush1.xpose.msra.mxu0 %v168
    %174 = vmatprep.subr.mxu0 0.0
    %175 = vmatpush1.xpose.msra.mxu0 0.0
    %176 = vmatprep.subr.mxu0 0.0
    %177 = vmatpush1.xpose.msra.mxu0 0.0
    %178 = vmatprep.subr.mxu0 0.0
    %179 = vmatpush1.xpose.msra.mxu0 0.0
    %180 = vmatprep.subr.mxu0 0.0
    %181 = vmatpush1.xpose.msra.mxu0 0.0
    %182 = vmatprep.subr.mxu0 0.0
    %183 = vmatpush1.xpose.msra.mxu0 0.0
    %184 = vmatprep.subr.mxu0 0.0
    %185 = vmatpush1.xpose.msra.mxu0 0.0
    %186 = vmatprep.subr.mxu0 0.0
    %187 = vmatpush1.xpose.msra.mxu0 0.0
    %188 = vmatprep.subr.mxu0 0.0
    %189 = vmatpush1.xpose.msra.mxu0 0.0
    %190 = vmatprep.subr.mxu0 0.0
    %191 = vmatpush1.xpose.msra.mxu0 0.0
    %192 = vmatprep.subr.mxu0 0.0
    %193 = vmatpush1.xpose.msra.mxu0 0.0
    %194 = vmatprep.subr.mxu0 0.0
    %195 = vmatpush1.xpose.msra.mxu0 0.0
    %196 = vmatprep.subr.mxu0 0.0
    %197 = vmatpush1.xpose.msra.mxu0 0.0
    %198 = vmatprep.subr.mxu0 0.0
    %199 = vmatpush1.xpose.msra.mxu0 0.0
    %200 = vmatprep.subr.mxu0 0.0
    %201 = vmatpush1.xpose.msra.mxu0 0.0
    %202 = vmatprep.subr.mxu0 0.0
    %203 = vmatpush1.xpose.msra.mxu0 0.0
    %204 = vmatprep.subr.mxu0 0.0
    %205 = vmatpush1.xpose.msra.mxu0 0.0
    %206 = vmatprep.subr.mxu0 0.0
    %207 = vmatpush1.xpose.msra.mxu0 0.0
    %208 = vmatprep.subr.mxu0 0.0
    %209 = vmatpush1.xpose.msra.mxu0 0.0
    %210 = vmatprep.subr.mxu0 0.0
    %211 = vmatpush1.xpose.msra.mxu0 0.0
    %212 = vmatprep.subr.mxu0 0.0
    %213 = vmatpush1.xpose.msra.mxu0 0.0
    %214 = vmatprep.subr.mxu0 0.0
    %215 = vmatpush1.xpose.msra.mxu0 0.0
    %216 = vmatprep.subr.mxu0 0.0
    %217 = vmatpush1.xpose.msra.mxu0 0.0
    %218 = vmatprep.subr.mxu0 0.0
    %219 = vmatpush1.xpose.msra.mxu0 0.0
    %220 = vmatprep.subr.mxu0 0.0
    %221 = vmatpush1.xpose.msra.mxu0 0.0
    %222 = vmatprep.subr.mxu0 0.0
    %223 = vmatpush1.xpose.msra.mxu0 0.0
    %224 = vmatprep.subr.mxu0 0.0
    %225 = vmatpush1.xpose.msra.mxu0 0.0
    %226 = vmatprep.subr.mxu0 0.0
    %227 = vmatpush1.xpose.msra.mxu0 0.0
    %228 = vmatprep.subr.mxu0 0.0
    %229 = vmatpush1.xpose.msra.mxu0 0.0
    %230 = vmatprep.subr.mxu0 0.0
    %231 = vmatpush1.xpose.msra.mxu0 0.0
    %232 = vmatprep.subr.mxu0 0.0
    %233 = vmatpush1.xpose.msra.mxu0 0.0
    %234 = vmatprep.mubr.f32.mxu0 0.0
    %235 = vmatmul.mubr.f32.gmra.mrb[0].mxu0 %v162
    %v236 = vpop.f32.mrb[0].mxu0
    %v237 = vadd.f32 %v41, %v236
    %v238 = vpop.f32.mrb[0].mxu0
    %239 = vmatprep.mubr.f32.mxu0 0.0
    %240 = vmatmul.mubr.f32.gmra.mrb[0].mxu0 %v164
    %v241 = vpop.f32.mrb[0].mxu0
    %v242 = vadd.f32 %v42, %v241
    %v243 = vpop.f32.mrb[0].mxu0
    %244 = vdwg.mxu0
    %v245 = vsel %vm161, %v237, -inf
    %246 = vmax.xlane.f32.xlu0 %v245
    %v247 = vpop.xlane.xlu0 %246
    %v248 = vsel %vm161, %v242, -inf
    %249 = vmax.xlane.f32.xlu0 %v248
    %v250 = vpop.xlane.xlu0 %249
    %v251 = vsub.f32 %v237, %v247
    %v252 = vsub.f32 %v242, %v250
    %v253 = vmul.f32 %v251, 1.442695
    %v254 = vpow.pop %v253
    %v255 = vmul.f32 %v252, 1.442695
    %v256 = vpow.pop %v255
    %v257 = vsel %vm161, %v254, 0.0
    %258 = vadd.xlane.f32.xlu0 %v257
    %v259 = vpop.xlane.xlu0 %258
    %v260 = vsel %vm161, %v256, 0.0
    %261 = vadd.xlane.f32.xlu0 %v260
    %v262 = vpop.xlane.xlu0 %261
    %v263 = vrcp.pop %v259
    %v264 = vrcp.pop %v262
    %v265 = vmul.f32 %v254, %v263
    %v266 = vmul.f32 %v256, %v264
    %267 = vrot.lane.b32.xlu0 %v147, 64
    %v268 = vpop.permute.xlu0 %267
    %269 = vrot.lane.b32.xlu0 %v152, 64
    %v270 = vpop.permute.xlu0 %269
    %v274 = vsel %vm161, %v265, 0
    %v277 = vsel %vm161, %v266, 0
    %279 = vmatprep.subr.mxu0 0.0
    %280 = vmatpush1.msra.mxu0 %v268
    %281 = vmatprep.subr.mxu0 0.0
    %282 = vmatpush1.msra.mxu0 %v270
    %283 = vmatprep.subr.mxu0 0.0
    %284 = vmatpush1.msra.mxu0 0.0
    %285 = vmatprep.subr.mxu0 0.0
    %286 = vmatpush1.msra.mxu0 0.0
    %287 = vmatprep.subr.mxu0 0.0
    %288 = vmatpush1.msra.mxu0 0.0
    %289 = vmatprep.subr.mxu0 0.0
    %290 = vmatpush1.msra.mxu0 0.0
    %291 = vmatprep.subr.mxu0 0.0
    %292 = vmatpush1.msra.mxu0 0.0
    %293 = vmatprep.subr.mxu0 0.0
    %294 = vmatpush1.msra.mxu0 0.0
    %295 = vmatprep.subr.mxu0 0.0
    %296 = vmatpush1.msra.mxu0 0.0
    %297 = vmatprep.subr.mxu0 0.0
    %298 = vmatpush1.msra.mxu0 0.0
    %299 = vmatprep.subr.mxu0 0.0
    %300 = vmatpush1.msra.mxu0 0.0
    %301 = vmatprep.subr.mxu0 0.0
    %302 = vmatpush1.msra.mxu0 0.0
    %303 = vmatprep.subr.mxu0 0.0
    %304 = vmatpush1.msra.mxu0 0.0
    %305 = vmatprep.subr.mxu0 0.0
    %306 = vmatpush1.msra.mxu0 0.0
    %307 = vmatprep.subr.mxu0 0.0
    %308 = vmatpush1.msra.mxu0 0.0
    %309 = vmatprep.subr.mxu0 0.0
    %310 = vmatpush1.msra.mxu0 0.0
    %311 = vmatprep.subr.mxu0 0.0
    %312 = vmatpush1.msra.mxu0 0.0
    %313 = vmatprep.subr.mxu0 0.0
    %314 = vmatpush1.msra.mxu0 0.0
    %315 = vmatprep.subr.mxu0 0.0
    %316 = vmatpush1.msra.mxu0 0.0
    %317 = vmatprep.subr.mxu0 0.0
    %318 = vmatpush1.msra.mxu0 0.0
    %319 = vmatprep.subr.mxu0 0.0
    %320 = vmatpush1.msra.mxu0 0.0
    %321 = vmatprep.subr.mxu0 0.0
    %322 = vmatpush1.msra.mxu0 0.0
    %323 = vmatprep.subr.mxu0 0.0
    %324 = vmatpush1.msra.mxu0 0.0
    %325 = vmatprep.subr.mxu0 0.0
    %326 = vmatpush1.msra.mxu0 0.0
    %327 = vmatprep.subr.mxu0 0.0
    %328 = vmatpush1.msra.mxu0 0.0
    %329 = vmatprep.subr.mxu0 0.0
    %330 = vmatpush1.msra.mxu0 0.0
    %331 = vmatprep.subr.mxu0 0.0
    %332 = vmatpush1.msra.mxu0 0.0
    %333 = vmatprep.subr.mxu0 0.0
    %334 = vmatpush1.msra.mxu0 0.0
    %335 = vmatprep.subr.mxu0 0.0
    %336 = vmatpush1.msra.mxu0 0.0
    %337 = vmatprep.subr.mxu0 0.0
    %338 = vmatpush1.msra.mxu0 0.0
    %339 = vmatprep.subr.mxu0 0.0
    %340 = vmatpush1.msra.mxu0 0.0
    %341 = vmatprep.subr.mxu0 0.0
    %342 = vmatpush1.msra.mxu0 0.0
    %343 = vmatprep.mubr.f32.mxu0 0.0
    %344 = vmatmul.mubr.f32.gmra.mrb[0].mxu0 %v274
    %v345 = vpop.f32.mrb[0].mxu0
    %v346 = vadd.f32 0.0, %v345
    %v347 = vpop.f32.mrb[0].mxu0
    %348 = vmatprep.mubr.f32.mxu0 0.0
    %349 = vmatmul.mubr.f32.gmra.mrb[0].mxu0 %v277
    %v350 = vpop.f32.mrb[0].mxu0
    %v351 = vadd.f32 0.0, %v350
    %v352 = vpop.f32.mrb[0].mxu0
    %353 = vdwg.mxu0
    %354 = vrot.lane.b32.xlu0 %v147, 112
    %v355 = vpop.permute.xlu0 %354
    %356 = vrot.lane.b32.xlu0 %v152, 112
    %v357 = vpop.permute.xlu0 %356
    %358 = vrot.lane.b32.xlu0 %v147, 80
    %v359 = vpop.permute.xlu0 %358
    %360 = vrot.lane.b32.xlu0 %v152, 80
    %v361 = vpop.permute.xlu0 %360
    %v362 = vsel %vm161, %v355, 0
    %v364 = vsel %vm161, %v357, 0
    %v366 = vsel %vm161, %v359, 0
    %v368 = vsel %vm161, %v361, 0
    %370 = vmatprep.subr.mxu0 0.0
    %371 = vmatpush1.xpose.msra.mxu0 %v366
    %372 = vmatprep.subr.mxu0 0.0
    %373 = vmatpush1.xpose.msra.mxu0 %v368
    %374 = vmatprep.subr.mxu0 0.0
    %375 = vmatpush1.xpose.msra.mxu0 0.0
    %376 = vmatprep.subr.mxu0 0.0
    %377 = vmatpush1.xpose.msra.mxu0 0.0
    %378 = vmatprep.subr.mxu0 0.0
    %379 = vmatpush1.xpose.msra.mxu0 0.0
    %380 = vmatprep.subr.mxu0 0.0
    %381 = vmatpush1.xpose.msra.mxu0 0.0
    %382 = vmatprep.subr.mxu0 0.0
    %383 = vmatpush1.xpose.msra.mxu0 0.0
    %384 = vmatprep.subr.mxu0 0.0
    %385 = vmatpush1.xpose.msra.mxu0 0.0
    %386 = vmatprep.subr.mxu0 0.0
    %387 = vmatpush1.xpose.msra.mxu0 0.0
    %388 = vmatprep.subr.mxu0 0.0
    %389 = vmatpush1.xpose.msra.mxu0 0.0
    %390 = vmatprep.subr.mxu0 0.0
    %391 = vmatpush1.xpose.msra.mxu0 0.0
    %392 = vmatprep.subr.mxu0 0.0
    %393 = vmatpush1.xpose.msra.mxu0 0.0
    %394 = vmatprep.subr.mxu0 0.0
    %395 = vmatpush1.xpose.msra.mxu0 0.0
    %396 = vmatprep.subr.mxu0 0.0
    %397 = vmatpush1.xpose.msra.mxu0 0.0
    %398 = vmatprep.subr.mxu0 0.0
    %399 = vmatpush1.xpose.msra.mxu0 0.0
    %400 = vmatprep.subr.mxu0 0.0
    %401 = vmatpush1.xpose.msra.mxu0 0.0
    %402 = vmatprep.subr.mxu0 0.0
    %403 = vmatpush1.xpose.msra.mxu0 0.0
    %404 = vmatprep.subr.mxu0 0.0
    %405 = vmatpush1.xpose.msra.mxu0 0.0
    %406 = vmatprep.subr.mxu0 0.0
    %407 = vmatpush1.xpose.msra.mxu0 0.0
    %408 = vmatprep.subr.mxu0 0.0
    %409 = vmatpush1.xpose.msra.mxu0 0.0
    %410 = vmatprep.subr.mxu0 0.0
    %411 = vmatpush1.xpose.msra.mxu0 0.0
    %412 = vmatprep.subr.mxu0 0.0
    %413 = vmatpush1.xpose.msra.mxu0 0.0
    %414 = vmatprep.subr.mxu0 0.0
    %415 = vmatpush1.xpose.msra.mxu0 0.0
    %416 = vmatprep.subr.mxu0 0.0
    %417 = vmatpush1.xpose.msra.mxu0 0.0
    %418 = vmatprep.subr.mxu0 0.0
    %419 = vmatpush1.xpose.msra.mxu0 0.0
    %420 = vmatprep.subr.mxu0 0.0
    %421 = vmatpush1.xpose.msra.mxu0 0.0
    %422 = vmatprep.subr.mxu0 0.0
    %423 = vmatpush1.xpose.msra.mxu0 0.0
    %424 = vmatprep.subr.mxu0 0.0
    %425 = vmatpush1.xpose.msra.mxu0 0.0
    %426 = vmatprep.subr.mxu0 0.0
    %427 = vmatpush1.xpose.msra.mxu0 0.0
    %428 = vmatprep.subr.mxu0 0.0
    %429 = vmatpush1.xpose.msra.mxu0 0.0
    %430 = vmatprep.subr.mxu0 0.0
    %431 = vmatpush1.xpose.msra.mxu0 0.0
    %432 = vmatprep.subr.mxu0 0.0
    %433 = vmatpush1.xpose.msra.mxu0 0.0
    %434 = vmatprep.mubr.f32.mxu0 0.0
    %435 = vmatmul.mubr.f32.gmra.mrb[0].mxu0 %v362
    %v436 = vpop.f32.mrb[0].mxu0
    %v437 = vadd.f32 %v41, %v436
    %v438 = vpop.f32.mrb[0].mxu0
    %439 = vmatprep.mubr.f32.mxu0 0.0
    %440 = vmatmul.mubr.f32.gmra.mrb[0].mxu0 %v364
    %v441 = vpop.f32.mrb[0].mxu0
    %v442 = vadd.f32 %v42, %v441
    %v443 = vpop.f32.mrb[0].mxu0
    %444 = vdwg.mxu0
    %v445 = vsel %vm161, %v437, -inf
    %446 = vmax.xlane.f32.xlu0 %v445
    %v447 = vpop.xlane.xlu0 %446
    %v448 = vsel %vm161, %v442, -inf
    %449 = vmax.xlane.f32.xlu0 %v448
    %v450 = vpop.xlane.xlu0 %449
    %v451 = vsub.f32 %v437, %v447
    %v452 = vsub.f32 %v442, %v450
    %v453 = vmul.f32 %v451, 1.442695
    %v454 = vpow.pop %v453
    %v455 = vmul.f32 %v452, 1.442695
    %v456 = vpow.pop %v455
    %v457 = vsel %vm161, %v454, 0.0
    %458 = vadd.xlane.f32.xlu0 %v457
    %v459 = vpop.xlane.xlu0 %458
    %v460 = vsel %vm161, %v456, 0.0
    %461 = vadd.xlane.f32.xlu0 %v460
    %v462 = vpop.xlane.xlu0 %461
    %v463 = vrcp.pop %v459
    %v464 = vrcp.pop %v462
    %v465 = vmul.f32 %v454, %v463
    %v466 = vmul.f32 %v456, %v464
    %467 = vrot.lane.b32.xlu0 %v147, 48
    %v468 = vpop.permute.xlu0 %467
    %469 = vrot.lane.b32.xlu0 %v152, 48
    %v470 = vpop.permute.xlu0 %469
    %v474 = vsel %vm161, %v465, 0
    %v477 = vsel %vm161, %v466, 0
    %479 = vmatprep.subr.mxu0 0.0
    %480 = vmatpush1.msra.mxu0 %v468
    %481 = vmatprep.subr.mxu0 0.0
    %482 = vmatpush1.msra.mxu0 %v470
    %483 = vmatprep.subr.mxu0 0.0
    %484 = vmatpush1.msra.mxu0 0.0
    %485 = vmatprep.subr.mxu0 0.0
    %486 = vmatpush1.msra.mxu0 0.0
    %487 = vmatprep.subr.mxu0 0.0
    %488 = vmatpush1.msra.mxu0 0.0
    %489 = vmatprep.subr.mxu0 0.0
    %490 = vmatpush1.msra.mxu0 0.0
    %491 = vmatprep.subr.mxu0 0.0
    %492 = vmatpush1.msra.mxu0 0.0
    %493 = vmatprep.subr.mxu0 0.0
    %494 = vmatpush1.msra.mxu0 0.0
    %495 = vmatprep.subr.mxu0 0.0
    %496 = vmatpush1.msra.mxu0 0.0
    %497 = vmatprep.subr.mxu0 0.0
    %498 = vmatpush1.msra.mxu0 0.0
    %499 = vmatprep.subr.mxu0 0.0
    %500 = vmatpush1.msra.mxu0 0.0
    %501 = vmatprep.subr.mxu0 0.0
    %502 = vmatpush1.msra.mxu0 0.0
    %503 = vmatprep.subr.mxu0 0.0
    %504 = vmatpush1.msra.mxu0 0.0
    %505 = vmatprep.subr.mxu0 0.0
    %506 = vmatpush1.msra.mxu0 0.0
    %507 = vmatprep.subr.mxu0 0.0
    %508 = vmatpush1.msra.mxu0 0.0
    %509 = vmatprep.subr.mxu0 0.0
    %510 = vmatpush1.msra.mxu0 0.0
    %511 = vmatprep.subr.mxu0 0.0
    %512 = vmatpush1.msra.mxu0 0.0
    %513 = vmatprep.subr.mxu0 0.0
    %514 = vmatpush1.msra.mxu0 0.0
    %515 = vmatprep.subr.mxu0 0.0
    %516 = vmatpush1.msra.mxu0 0.0
    %517 = vmatprep.subr.mxu0 0.0
    %518 = vmatpush1.msra.mxu0 0.0
    %519 = vmatprep.subr.mxu0 0.0
    %520 = vmatpush1.msra.mxu0 0.0
    %521 = vmatprep.subr.mxu0 0.0
    %522 = vmatpush1.msra.mxu0 0.0
    %523 = vmatprep.subr.mxu0 0.0
    %524 = vmatpush1.msra.mxu0 0.0
    %525 = vmatprep.subr.mxu0 0.0
    %526 = vmatpush1.msra.mxu0 0.0
    %527 = vmatprep.subr.mxu0 0.0
    %528 = vmatpush1.msra.mxu0 0.0
    %529 = vmatprep.subr.mxu0 0.0
    %530 = vmatpush1.msra.mxu0 0.0
    %531 = vmatprep.subr.mxu0 0.0
    %532 = vmatpush1.msra.mxu0 0.0
    %533 = vmatprep.subr.mxu0 0.0
    %534 = vmatpush1.msra.mxu0 0.0
    %535 = vmatprep.subr.mxu0 0.0
    %536 = vmatpush1.msra.mxu0 0.0
    %537 = vmatprep.subr.mxu0 0.0
    %538 = vmatpush1.msra.mxu0 0.0
    %539 = vmatprep.subr.mxu0 0.0
    %540 = vmatpush1.msra.mxu0 0.0
    %541 = vmatprep.subr.mxu0 0.0
    %542 = vmatpush1.msra.mxu0 0.0
    %543 = vmatprep.mubr.f32.mxu0 0.0
    %544 = vmatmul.mubr.f32.gmra.mrb[0].mxu0 %v474
    %v545 = vpop.f32.mrb[0].mxu0
    %v546 = vadd.f32 0.0, %v545
    %v547 = vpop.f32.mrb[0].mxu0
    %548 = vmatprep.mubr.f32.mxu0 0.0
    %549 = vmatmul.mubr.f32.gmra.mrb[0].mxu0 %v477
    %v550 = vpop.f32.mrb[0].mxu0
    %v551 = vadd.f32 0.0, %v550
    %v552 = vpop.f32.mrb[0].mxu0
    %553 = vdwg.mxu0
    %556 = vrot.lane.b32.xlu0 %v546, 16
    %v557 = vpop.permute.xlu0 %556
    %558 = vrot.lane.b32.xlu0 %v551, 16
    %v559 = vpop.permute.xlu0 %558
    %v562 = vsel %vm161, %v346, %v557
    %v563 = vsel %vm161, %v351, %v559
    %v564 = vld [vmem:[%s4] sm:$0xff]
    %v565 = vld [vmem:[%s4 + $0x8] sm:$0xff]
    %v566 = vld [vmem:[%s4 + $0x10] sm:$0xff]
    %v567 = vld [vmem:[%s4 + $0x18] sm:$0xff]
    %v569 = vsel %vm46, %v562, 0
    %v572 = vsel %vm46, %v563, 0
    %574 = vmatprep.subr.mxu0 0.0
    %575 = vmatpush1.msra.mxu0 %v564
    %576 = vmatprep.subr.mxu0 0.0
    %577 = vmatpush1.msra.mxu0 %v565
    %578 = vmatprep.subr.mxu0 0.0
    %579 = vmatpush1.msra.mxu0 %v566
    %580 = vmatprep.subr.mxu0 0.0
    %581 = vmatpush1.msra.mxu0 %v567
    %582 = vmatprep.subr.mxu0 0.0
    %583 = vmatpush1.msra.mxu0 0.0
    %584 = vmatprep.subr.mxu0 0.0
    %585 = vmatpush1.msra.mxu0 0.0
    %586 = vmatprep.subr.mxu0 0.0
    %587 = vmatpush1.msra.mxu0 0.0
    %588 = vmatprep.subr.mxu0 0.0
    %589 = vmatpush1.msra.mxu0 0.0
    %590 = vmatprep.subr.mxu0 0.0
    %591 = vmatpush1.msra.mxu0 0.0
    %592 = vmatprep.subr.mxu0 0.0
    %593 = vmatpush1.msra.mxu0 0.0
    %594 = vmatprep.subr.mxu0 0.0
    %595 = vmatpush1.msra.mxu0 0.0
    %596 = vmatprep.subr.mxu0 0.0
    %597 = vmatpush1.msra.mxu0 0.0
    %598 = vmatprep.subr.mxu0 0.0
    %599 = vmatpush1.msra.mxu0 0.0
    %600 = vmatprep.subr.mxu0 0.0
    %601 = vmatpush1.msra.mxu0 0.0
    %602 = vmatprep.subr.mxu0 0.0
    %603 = vmatpush1.msra.mxu0 0.0
    %604 = vmatprep.subr.mxu0 0.0
    %605 = vmatpush1.msra.mxu0 0.0
    %606 = vmatprep.subr.mxu0 0.0
    %607 = vmatpush1.msra.mxu0 0.0
    %608 = vmatprep.subr.mxu0 0.0
    %609 = vmatpush1.msra.mxu0 0.0
    %610 = vmatprep.subr.mxu0 0.0
    %611 = vmatpush1.msra.mxu0 0.0
    %612 = vmatprep.subr.mxu0 0.0
    %613 = vmatpush1.msra.mxu0 0.0
    %614 = vmatprep.subr.mxu0 0.0
    %615 = vmatpush1.msra.mxu0 0.0
    %616 = vmatprep.subr.mxu0 0.0
    %617 = vmatpush1.msra.mxu0 0.0
    %618 = vmatprep.subr.mxu0 0.0
    %619 = vmatpush1.msra.mxu0 0.0
    %620 = vmatprep.subr.mxu0 0.0
    %621 = vmatpush1.msra.mxu0 0.0
    %622 = vmatprep.subr.mxu0 0.0
    %623 = vmatpush1.msra.mxu0 0.0
    %624 = vmatprep.subr.mxu0 0.0
    %625 = vmatpush1.msra.mxu0 0.0
    %626 = vmatprep.subr.mxu0 0.0
    %627 = vmatpush1.msra.mxu0 0.0
    %628 = vmatprep.subr.mxu0 0.0
    %629 = vmatpush1.msra.mxu0 0.0
    %630 = vmatprep.subr.mxu0 0.0
    %631 = vmatpush1.msra.mxu0 0.0
    %632 = vmatprep.subr.mxu0 0.0
    %633 = vmatpush1.msra.mxu0 0.0
    %634 = vmatprep.subr.mxu0 0.0
    %635 = vmatpush1.msra.mxu0 0.0
    %636 = vmatprep.subr.mxu0 0.0
    %637 = vmatpush1.msra.mxu0 0.0
    %638 = vmatprep.mubr.f32.mxu0 0.0
    %639 = vmatmul.mubr.f32.gmra.mrb[0].mxu0 %v569
    %v640 = vpop.f32.mrb[0].mxu0
    %v641 = vadd.f32 0.0, %v640
    %v642 = vpop.f32.mrb[0].mxu0
    %643 = vmatprep.mubr.f32.mxu0 0.0
    %644 = vmatmul.mubr.f32.gmra.mrb[0].mxu0 %v572
    %v645 = vpop.f32.mrb[0].mxu0
    %v646 = vadd.f32 0.0, %v645
    %v647 = vpop.f32.mrb[0].mxu0
    %648 = vdwg.mxu0
    %v649 = vadd.f32 %v39, %v641
    %v650 = vadd.f32 %v40, %v646
    %v651 = vld [vmem:[%s5] sm:$0x1]
    %v652 = vmul.f32 %v649, %v649
    %v653 = vmul.f32 %v650, %v650
    %v654 = vsel %vm46, %v652, 0.0
    %655 = vadd.xlane.f32.xlu0 %v654
    %v656 = vpop.xlane.xlu0 %655
    %v657 = vsel %vm46, %v653, 0.0
    %658 = vadd.xlane.f32.xlu0 %v657
    %v659 = vpop.xlane.xlu0 %658
    %v660 = vmul.f32 %v656, %v53
    %v661 = vmul.f32 %v659, %v53
    %v662 = vadd.f32 %v660, 1e-06
    %v663 = vadd.f32 %v661, 1e-06
    %v664 = vrsqrt.pop %v662
    %v665 = vrsqrt.pop %v663
    %v666 = vmul.f32 %v649, %v664
    %v667 = vmul.f32 %v650, %v665
    %v669 = vlaneseq
    %v670 = vshrl.u32 %v669, 7
    %v671 = vsub.s32 0, %v670
    %v672 = vrot.slane %v651, %v671
    %v674 = vmul.f32 %v666, %v672
    %v675 = vmul.f32 %v667, %v672
    %v676 = vld [vmem:[%s6] sm:$0xff]
    %v677 = vld [vmem:[%s6 + $0x8] sm:$0xff]
    %v678 = vld [vmem:[%s6 + $0x10] sm:$0xff]
    %v679 = vld [vmem:[%s6 + $0x18] sm:$0xff]
    %v681 = vsel %vm46, %v674, 0
    %v684 = vsel %vm46, %v675, 0
    %686 = vmatprep.subr.mxu0 0.0
    %687 = vmatpush1.msra.mxu0 %v676
    %688 = vmatprep.subr.mxu0 0.0
    %689 = vmatpush1.msra.mxu0 %v677
    %690 = vmatprep.subr.mxu0 0.0
    %691 = vmatpush1.msra.mxu0 %v678
    %692 = vmatprep.subr.mxu0 0.0
    %693 = vmatpush1.msra.mxu0 %v679
    %694 = vmatprep.subr.mxu0 0.0
    %695 = vmatpush1.msra.mxu0 0.0
    %696 = vmatprep.subr.mxu0 0.0
    %697 = vmatpush1.msra.mxu0 0.0
    %698 = vmatprep.subr.mxu0 0.0
    %699 = vmatpush1.msra.mxu0 0.0
    %700 = vmatprep.subr.mxu0 0.0
    %701 = vmatpush1.msra.mxu0 0.0
    %702 = vmatprep.subr.mxu0 0.0
    %703 = vmatpush1.msra.mxu0 0.0
    %704 = vmatprep.subr.mxu0 0.0
    %705 = vmatpush1.msra.mxu0 0.0
    %706 = vmatprep.subr.mxu0 0.0
    %707 = vmatpush1.msra.mxu0 0.0
    %708 = vmatprep.subr.mxu0 0.0
    %709 = vmatpush1.msra.mxu0 0.0
    %710 = vmatprep.subr.mxu0 0.0
    %711 = vmatpush1.msra.mxu0 0.0
    %712 = vmatprep.subr.mxu0 0.0
    %713 = vmatpush1.msra.mxu0 0.0
    %714 = vmatprep.subr.mxu0 0.0
    %715 = vmatpush1.msra.mxu0 0.0
    %716 = vmatprep.subr.mxu0 0.0
    %717 = vmatpush1.msra.mxu0 0.0
    %718 = vmatprep.subr.mxu0 0.0
    %719 = vmatpush1.msra.mxu0 0.0
    %720 = vmatprep.subr.mxu0 0.0
    %721 = vmatpush1.msra.mxu0 0.0
    %722 = vmatprep.subr.mxu0 0.0
    %723 = vmatpush1.msra.mxu0 0.0
    %724 = vmatprep.subr.mxu0 0.0
    %725 = vmatpush1.msra.mxu0 0.0
    %726 = vmatprep.subr.mxu0 0.0
    %727 = vmatpush1.msra.mxu0 0.0
    %728 = vmatprep.subr.mxu0 0.0
    %729 = vmatpush1.msra.mxu0 0.0
    %730 = vmatprep.subr.mxu0 0.0
    %731 = vmatpush1.msra.mxu0 0.0
    %732 = vmatprep.subr.mxu0 0.0
    %733 = vmatpush1.msra.mxu0 0.0
    %734 = vmatprep.subr.mxu0 0.0
    %735 = vmatpush1.msra.mxu0 0.0
    %736 = vmatprep.subr.mxu0 0.0
    %737 = vmatpush1.msra.mxu0 0.0
    %738 = vmatprep.subr.mxu0 0.0
    %739 = vmatpush1.msra.mxu0 0.0
    %740 = vmatprep.subr.mxu0 0.0
    %741 = vmatpush1.msra.mxu0 0.0
    %742 = vmatprep.subr.mxu0 0.0
    %743 = vmatpush1.msra.mxu0 0.0
    %744 = vmatprep.subr.mxu0 0.0
    %745 = vmatpush1.msra.mxu0 0.0
    %746 = vmatprep.subr.mxu0 0.0
    %747 = vmatpush1.msra.mxu0 0.0
    %748 = vmatprep.subr.mxu0 0.0
    %749 = vmatpush1.msra.mxu0 0.0
    %750 = vmatprep.mubr.f32.mxu0 0.0
    %751 = vmatmul.mubr.f32.gmra.mrb[0].mxu0 %v681
    %v752 = vpop.f32.mrb[0].mxu0
    %v753 = vadd.f32 0.0, %v752
    %v754 = vpop.f32.mrb[0].mxu0
    %755 = vmatprep.mubr.f32.mxu0 0.0
    %756 = vmatmul.mubr.f32.gmra.mrb[0].mxu0 %v684
    %v757 = vpop.f32.mrb[0].mxu0
    %v758 = vadd.f32 0.0, %v757
    %v759 = vpop.f32.mrb[0].mxu0
    %760 = vdwg.mxu0
    %v761 = vmul.f32 %v753, %v753
    %v762 = vmul.f32 %v758, %v758
    %v763 = vmul.f32 %v753, %v761
    %v764 = vmul.f32 %v758, %v762
    %v765 = vmul.f32 %v763, 0.044715
    %v766 = vmul.f32 %v764, 0.044715
    %v767 = vadd.f32 %v753, %v765
    %v768 = vadd.f32 %v758, %v766
    %v769 = vmul.f32 %v767, 0.7978846
    %v770 = vmul.f32 %v768, 0.7978846
    %v771 = vtanh.pop %v769
    %v772 = vtanh.pop %v770
    %v773 = vadd.f32 %v771, 1.0
    %v774 = vadd.f32 %v772, 1.0
    %v775 = vmul.f32 %v773, 0.5
    %v776 = vmul.f32 %v774, 0.5
    %v777 = vmul.f32 %v753, %v775
    %v778 = vmul.f32 %v758, %v776
    %781 = vrot.lane.b32.xlu0 %v753, 64
    %v782 = vpop.permute.xlu0 %781
    %783 = vrot.lane.b32.xlu0 %v758, 64
    %v784 = vpop.permute.xlu0 %783
    %v787 = vmul.f32 %v777, %v782
    %v788 = vmul.f32 %v778, %v784
    %v789 = vld [vmem:[%s7] sm:$0xff]
    %v790 = vld [vmem:[%s7 + $0x8] sm:$0xff]
    %v791 = vld [vmem:[%s7 + $0x10] sm:$0xff]
    %v792 = vld [vmem:[%s7 + $0x18] sm:$0xff]
    %v793 = vld [vmem:[%s7 + $0x20] sm:$0xff]
    %v794 = vld [vmem:[%s7 + $0x28] sm:$0xff]
    %v795 = vld [vmem:[%s7 + $0x30] sm:$0xff]
    %v796 = vld [vmem:[%s7 + $0x38] sm:$0xff]
    %vm797 = vcmask 523264
    %v799 = vsel %vm797, %v787, 0
    %v802 = vsel %vm797, %v788, 0
    %804 = vmatprep.subr.mxu0 0.0
    %805 = vmatpush1.msra.mxu0 %v789
    %806 = vmatprep.subr.mxu0 0.0
    %807 = vmatpush1.msra.mxu0 %v790
    %808 = vmatprep.subr.mxu0 0.0
    %809 = vmatpush1.msra.mxu0 %v791
    %810 = vmatprep.subr.mxu0 0.0
    %811 = vmatpush1.msra.mxu0 %v792
    %812 = vmatprep.subr.mxu0 0.0
    %813 = vmatpush1.msra.mxu0 %v793
    %814 = vmatprep.subr.mxu0 0.0
    %815 = vmatpush1.msra.mxu0 %v794
    %816 = vmatprep.subr.mxu0 0.0
    %817 = vmatpush1.msra.mxu0 %v795
    %818 = vmatprep.subr.mxu0 0.0
    %819 = vmatpush1.msra.mxu0 %v796
    %820 = vmatprep.subr.mxu0 0.0
    %821 = vmatpush1.msra.mxu0 0.0
    %822 = vmatprep.subr.mxu0 0.0
    %823 = vmatpush1.msra.mxu0 0.0
    %824 = vmatprep.subr.mxu0 0.0
    %825 = vmatpush1.msra.mxu0 0.0
    %826 = vmatprep.subr.mxu0 0.0
    %827 = vmatpush1.msra.mxu0 0.0
    %828 = vmatprep.subr.mxu0 0.0
    %829 = vmatpush1.msra.mxu0 0.0
    %830 = vmatprep.subr.mxu0 0.0
    %831 = vmatpush1.msra.mxu0 0.0
    %832 = vmatprep.subr.mxu0 0.0
    %833 = vmatpush1.msra.mxu0 0.0
    %834 = vmatprep.subr.mxu0 0.0
    %835 = vmatpush1.msra.mxu0 0.0
    %836 = vmatprep.subr.mxu0 0.0
    %837 = vmatpush1.msra.mxu0 0.0
    %838 = vmatprep.subr.mxu0 0.0
    %839 = vmatpush1.msra.mxu0 0.0
    %840 = vmatprep.subr.mxu0 0.0
    %841 = vmatpush1.msra.mxu0 0.0
    %842 = vmatprep.subr.mxu0 0.0
    %843 = vmatpush1.msra.mxu0 0.0
    %844 = vmatprep.subr.mxu0 0.0
    %845 = vmatpush1.msra.mxu0 0.0
    %846 = vmatprep.subr.mxu0 0.0
    %847 = vmatpush1.msra.mxu0 0.0
    %848 = vmatprep.subr.mxu0 0.0
    %849 = vmatpush1.msra.mxu0 0.0
    %850 = vmatprep.subr.mxu0 0.0
    %851 = vmatpush1.msra.mxu0 0.0
    %852 = vmatprep.subr.mxu0 0.0
    %853 = vmatpush1.msra.mxu0 0.0
    %854 = vmatprep.subr.mxu0 0.0
    %855 = vmatpush1.msra.mxu0 0.0
    %856 = vmatprep.subr.mxu0 0.0
    %857 = vmatpush1.msra.mxu0 0.0
    %858 = vmatprep.subr.mxu0 0.0
    %859 = vmatpush1.msra.mxu0 0.0
    %860 = vmatprep.subr.mxu0 0.0
    %861 = vmatpush1.msra.mxu0 0.0
    %862 = vmatprep.subr.mxu0 0.0
    %863 = vmatpush1.msra.mxu0 0.0
    %864 = vmatprep.subr.mxu0 0.0
    %865 = vmatpush1.msra.mxu0 0.0
    %866 = vmatprep.subr.mxu0 0.0
    %867 = vmatpush1.msra.mxu0 0.0
    %868 = vmatprep.mubr.f32.mxu0 0.0
    %869 = vmatmul.mubr.f32.gmra.mrb[0].mxu0 %v799
    %v870 = vpop.f32.mrb[0].mxu0
    %v871 = vadd.f32 0.0, %v870
    %v872 = vpop.f32.mrb[0].mxu0
    %873 = vmatprep.mubr.f32.mxu0 0.0
    %874 = vmatmul.mubr.f32.gmra.mrb[0].mxu0 %v802
    %v875 = vpop.f32.mrb[0].mxu0
    %v876 = vpop.f32.mrb[0].mxu0
    %877 = vdwg.mxu0
    %v878 = vadd.f32 %v649, %v871
    %v879 = vld [vmem:[%s8] sm:$0x1]
    %v880 = vmul.f32 %v878, %v878
    %vm881 = vcmask 254976
    %v882 = vsel %vm881, %v880, 0.0
    %883 = vadd.xlane.f32.xlu0 %v882
    %v884 = vpop.xlane.xlu0 %883
    %v885 = vmul.f32 %v884, %v53
    %v886 = vadd.f32 %v885, 1e-06
    %v887 = vrsqrt.pop %v886
    %v888 = vmul.f32 %v878, %v887
    %v890 = vlaneseq
    %v891 = vshrl.u32 %v890, 7
    %v892 = vsub.s32 0, %v891
    %v893 = vrot.slane %v879, %v892
    %v895 = vmul.f32 %v888, %v893
    %v896 = vld [vmem:[%s9] sm:$0xff]
    %v897 = vld [vmem:[%s9 + $0x8] sm:$0xff]
    %v898 = vld [vmem:[%s9 + $0x10] sm:$0xff]
    %v899 = vld [vmem:[%s9 + $0x18] sm:$0xff]
    %v900 = vld [vmem:[%s10] sm:$0x1]
    %v902 = vlaneseq
    %v903 = vshrl.u32 %v902, 7
    %v904 = vsub.s32 0, %v903
    %v905 = vrot.slane %v900, %v904
    %v908 = vsel %vm46, %v895, 0
    %910 = vmatprep.subr.mxu0 0.0
    %911 = vmatpush1.msra.mxu0 %v896
    %912 = vmatprep.subr.mxu0 0.0
    %913 = vmatpush1.msra.mxu0 %v897
    %914 = vmatprep.subr.mxu0 0.0
    %915 = vmatpush1.msra.mxu0 %v898
    %916 = vmatprep.subr.mxu0 0.0
    %917 = vmatpush1.msra.mxu0 %v899
    %918 = vmatprep.subr.mxu0 0.0
    %919 = vmatpush1.msra.mxu0 0.0
    %920 = vmatprep.subr.mxu0 0.0
    %921 = vmatpush1.msra.mxu0 0.0
    %922 = vmatprep.subr.mxu0 0.0
    %923 = vmatpush1.msra.mxu0 0.0
    %924 = vmatprep.subr.mxu0 0.0
    %925 = vmatpush1.msra.mxu0 0.0
    %926 = vmatprep.subr.mxu0 0.0
    %927 = vmatpush1.msra.mxu0 0.0
    %928 = vmatprep.subr.mxu0 0.0
    %929 = vmatpush1.msra.mxu0 0.0
    %930 = vmatprep.subr.mxu0 0.0
    %931 = vmatpush1.msra.mxu0 0.0
    %932 = vmatprep.subr.mxu0 0.0
    %933 = vmatpush1.msra.mxu0 0.0
    %934 = vmatprep.subr.mxu0 0.0
    %935 = vmatpush1.msra.mxu0 0.0
    %936 = vmatprep.subr.mxu0 0.0
    %937 = vmatpush1.msra.mxu0 0.0
    %938 = vmatprep.subr.mxu0 0.0
    %939 = vmatpush1.msra.mxu0 0.0
    %940 = vmatprep.subr.mxu0 0.0
    %941 = vmatpush1.msra.mxu0 0.0
    %942 = vmatprep.subr.mxu0 0.0
    %943 = vmatpush1.msra.mxu0 0.0
    %944 = vmatprep.subr.mxu0 0.0
    %945 = vmatpush1.msra.mxu0 0.0
    %946 = vmatprep.subr.mxu0 0.0
    %947 = vmatpush1.msra.mxu0 0.0
    %948 = vmatprep.subr.mxu0 0.0
    %949 = vmatpush1.msra.mxu0 0.0
    %950 = vmatprep.subr.mxu0 0.0
    %951 = vmatpush1.msra.mxu0 0.0
    %952 = vmatprep.subr.mxu0 0.0
    %953 = vmatpush1.msra.mxu0 0.0
    %954 = vmatprep.subr.mxu0 0.0
    %955 = vmatpush1.msra.mxu0 0.0
    %956 = vmatprep.subr.mxu0 0.0
    %957 = vmatpush1.msra.mxu0 0.0
    %958 = vmatprep.subr.mxu0 0.0
    %959 = vmatpush1.msra.mxu0 0.0
    %960 = vmatprep.subr.mxu0 0.0
    %961 = vmatpush1.msra.mxu0 0.0
    %962 = vmatprep.subr.mxu0 0.0
    %963 = vmatpush1.msra.mxu0 0.0
    %964 = vmatprep.subr.mxu0 0.0
    %965 = vmatpush1.msra.mxu0 0.0
    %966 = vmatprep.subr.mxu0 0.0
    %967 = vmatpush1.msra.mxu0 0.0
    %968 = vmatprep.subr.mxu0 0.0
    %969 = vmatpush1.msra.mxu0 0.0
    %970 = vmatprep.subr.mxu0 0.0
    %971 = vmatpush1.msra.mxu0 0.0
    %972 = vmatprep.subr.mxu0 0.0
    %973 = vmatpush1.msra.mxu0 0.0
    %974 = vmatprep.mubr.f32.mxu0 0.0
    %975 = vmatmul.mubr.f32.gmra.mrb[0].mxu0 %v908
    %v976 = vpop.f32.mrb[0].mxu0
    %v977 = vadd.f32 %v905, %v976
    %v978 = vpop.f32.mrb[0].mxu0
    %979 = vdwg.mxu0
    %980 = vst [vmem:[#allocation2] sm:$0x3] %v977
    // Predicated region
    $region46: #{custom_mt5_forward.1} parent=1 // pred_check
      _
    $region47: #{custom_mt5_forward.1} parent=1 // pred_check_branch
      %982 = sbr.rel (0) target = $region49
    $region48: #{custom_mt5_forward.1} parent=1 // pred_region
      %s984 = ssub.s32 32, 32
      %985 = vsyncadd [#allocation3], %s984
      %s987 = sshll.u32 [#allocation2], 4
      %s988 = int_to_ptr.vmem [resolvable:$true] %s987
      %990 = dma.vmem_to_hbm [thread:$0]  %s988, 32, %s11, [#allocation3]
    $region49: #{custom_mt5_forward.1} parent=1 // pred_fallthru
      _
    // Predicated region
    $region50: #{custom_mt5_forward.1} parent=1 // pred_check
      _
    $region51: #{custom_mt5_forward.1} parent=1 // pred_check_branch
      %992 = sbr.rel (0) target = $region53
    $region52: #{custom_mt5_forward.1} parent=1 // pred_region
      %993 = dma.done [#allocation3], 32
    $region53: #{custom_mt5_forward.1} parent=1 // pred_fallthru
      _
    %994 = vsyncpa [#allocation3], 1

</llo_original>
